<compile_context>
chip_gen: v5e
topology: v5e:2x2
jax: 0.10.0
libtpu: 0.0.40
codegen_flags: <defaults>
</compile_context>

<pallas_src>
import functools
import math

import jax
import jax.numpy as jnp
from jax.experimental import pallas as pl
from jax.experimental.pallas import tpu as pltpu

LN_EPS = 1e-6                  # matches AddNorm -> nn.LayerNorm(embed_dim, 1e-6)
MATMUL_DTYPE = jnp.bfloat16    # MXU-native operand dtype; accumulation stays f32


def _round_up(x, m):
    return ((x + m - 1) // m) * m


@functools.lru_cache(maxsize=1)
def _tpu_vmem_bytes():
    try:
        return int(pltpu.get_tpu_info().vmem_capacity_bytes)
    except Exception:
        return 64 * 1024 * 1024


def _vmem_limit_bytes():
    # ~75% of physical VMEM: ~96 MiB on v5e/v6e (128 MiB), ~48 MiB on v7x (64 MiB).
    return int(_tpu_vmem_bytes() * 3 // 4)


def _default_tile_s():
    # 512 on 128 MiB-VMEM chips (v5e/v6e); 256 on v7x's 64 MiB.
    return 512 if _tpu_vmem_bytes() >= (100 << 20) else 256


def _mm(a, b):
    # MXU matmul: bf16 operands, f32 accumulation.
    return jnp.dot(a.astype(MATMUL_DTYPE), b.astype(MATMUL_DTYPE),
                   preferred_element_type=jnp.float32)


def _bmm(eq, a, b):
    # Batched (per-head) MXU matmul: bf16 operands, f32 accumulation.
    return jnp.einsum(eq, a.astype(MATMUL_DTYPE), b.astype(MATMUL_DTYPE),
                      preferred_element_type=jnp.float32)


def _layernorm(v, g, b):
    # PyTorch nn.LayerNorm: biased variance over last dim, eps inside rsqrt.
    mu = jnp.mean(v, axis=-1, keepdims=True)
    var = jnp.mean((v - mu) ** 2, axis=-1, keepdims=True)
    return (v - mu) * jax.lax.rsqrt(var + LN_EPS) * g + b


# ----------------------------- QKV projection --------------------------------
def qkv_proj_kernel(x_ref, wq_ref, bq_ref, wk_ref, bk_ref, wv_ref, bv_ref,
                    q_ref, k_ref, v_ref, *, num_heads, head_dim):
    x = x_ref[0]                                   # (TILE_S, E)
    scale = 1.0 / math.sqrt(head_dim)

    # Scale folded into q once here (cheaper than scaling (TILE_S, S) scores
    # per head in the attention kernel).
    q = (_mm(x, wq_ref[...]) + bq_ref[...]) * scale
    k = _mm(x, wk_ref[...]) + bk_ref[...]
    v = _mm(x, wv_ref[...]) + bv_ref[...]

    # Emit head-major (H, TILE_S, D) so the attention kernel works on batched
    # per-head blocks instead of slicing 64-lane heads out of (TILE_S, E)
    # repeatedly for every q-tile.
    for h in range(num_heads):
        lo = h * head_dim
        q_ref[0, h] = q[:, lo:lo + head_dim]
        k_ref[0, h] = k[:, lo:lo + head_dim]
        v_ref[0, h] = v[:, lo:lo + head_dim]


def run_qkv_proj(x, p, num_heads, *, tile_s):
    B, S, E = x.shape
    head_dim = E // num_heads
    weights = [p['wq'], p['bq'], p['wk'], p['bk'], p['wv'], p['bv']]
    # Constant-index weight blocks: single buffer (double-buffering them is
    # pure VMEM waste).
    w_specs = [pl.BlockSpec(w.shape, lambda b, si: (0, 0),
                            pipeline_mode=pl.Buffered(1)) for w in weights]
    head_shape = jax.ShapeDtypeStruct((B, num_heads, S, head_dim), jnp.float32)

    def head_spec():
        return pl.BlockSpec((1, num_heads, tile_s, head_dim),
                            lambda b, si: (b, 0, si, 0))

    return pl.pallas_call(
        functools.partial(qkv_proj_kernel,
                          num_heads=num_heads, head_dim=head_dim),
        out_shape=(head_shape, head_shape, head_shape),
        grid=(B, pl.cdiv(S, tile_s)),
        in_specs=[pl.BlockSpec((1, tile_s, E), lambda b, si: (b, si, 0))]
                 + w_specs,
        out_specs=(head_spec(), head_spec(), head_spec()),
        compiler_params=pltpu.CompilerParams(
            dimension_semantics=("parallel", "parallel"),
            vmem_limit_bytes=_vmem_limit_bytes()),
    )(x, *weights)


# ------------------------- attention + FFN (fused) ----------------------------
def attn_ffn_kernel(x_ref, q_ref, k_ref, v_ref,
                    wo_ref, bo_ref, ln1g_ref, ln1b_ref,
                    w1_ref, b1_ref, w2_ref, b2_ref,
                    ln2g_ref, ln2b_ref, out_ref, *, num_heads):
    x = x_ref[0]    # (TILE_S, E) residual input
    q = q_ref[0]    # (H, TILE_S, D), already scaled by 1/sqrt(D)
    k = k_ref[0]    # (H, S, D)
    v = v_ref[0]    # (H, S, D)

    # Batched per-head scores — contraction on the last dim, no explicit .T.
    s = _bmm('hqd,hkd->hqk', q, k)                 # (H, TILE_S, S) f32
    s = s - jnp.max(s, axis=-1, keepdims=True)
    p = jnp.exp(s)
    # EUP approx reciprocal: the softmax divide leaves the VALU slot.
    p = p * pl.reciprocal(jnp.sum(p, axis=-1, keepdims=True), approx=True)
    ctx = _bmm('hqk,hkd->hqd', p, v)               # (H, TILE_S, D) f32

    # Merge heads -> (TILE_S, E), then ONE K=E output projection.
    attn = jnp.concatenate([ctx[h] for h in range(num_heads)], axis=-1)
    attn = _mm(attn, wo_ref[...]) + bo_ref[...]

    # AddNorm 1
    y = _layernorm(x + attn, ln1g_ref[...], ln1b_ref[...])
    # FFN (ReLU)
    h1 = jnp.maximum(_mm(y, w1_ref[...]) + b1_ref[...], 0.0)
    ffn = _mm(h1, w2_ref[...]) + b2_ref[...]
    # AddNorm 2
    out_ref[0] = _layernorm(y + ffn, ln2g_ref[...], ln2b_ref[...])


def run_attn_ffn(x, q, k, v, p, num_heads, *, tile_s):
    B, S, E = x.shape
    head_dim = E // num_heads
    weights = [p['wo'], p['bo'], p['ln1_g'], p['ln1_b'],
               p['w1'], p['b1'], p['w2'], p['b2'], p['ln2_g'], p['ln2_b']]
    w_specs = [pl.BlockSpec(w.shape, lambda b, qi: (0, 0),
                            pipeline_mode=pl.Buffered(1)) for w in weights]
    return pl.pallas_call(
        functools.partial(attn_ffn_kernel, num_heads=num_heads),
        out_shape=jax.ShapeDtypeStruct((B, S, E), jnp.float32),
        grid=(B, pl.cdiv(S, tile_s)),
        in_specs=[pl.BlockSpec((1, tile_s, E), lambda b, qi: (b, qi, 0)),
                  pl.BlockSpec((1, num_heads, tile_s, head_dim),
                               lambda b, qi: (b, 0, qi, 0)),
                  # TODO(synk): flash-style K/V tiling for S >= ~2k on v7x.
                  pl.BlockSpec((1, num_heads, S, head_dim),
                               lambda b, qi: (b, 0, 0, 0)),
                  pl.BlockSpec((1, num_heads, S, head_dim),
                               lambda b, qi: (b, 0, 0, 0))]
                 + w_specs,
        out_specs=pl.BlockSpec((1, tile_s, E), lambda b, qi: (b, qi, 0)),
        compiler_params=pltpu.CompilerParams(
            dimension_semantics=("parallel", "parallel"),
            vmem_limit_bytes=_vmem_limit_bytes()),
    )(x, q, k, v, *weights)


def run_transformer_block(x, p, num_heads, *, tile_s):
    S = x.shape[1]
    ts = min(tile_s, S)
    q, k, v = run_qkv_proj(x, p, num_heads, tile_s=ts)
    return run_attn_ffn(x, q, k, v, p, num_heads, tile_s=ts)


# -------------------------------- lm_head ------------------------------------
def lm_head_kernel(x_ref, w_ref, b_ref, out_ref):
    out_ref[0] = (_mm(x_ref[0], w_ref[...]) + b_ref[...]).astype(out_ref.dtype)


def run_lm_head(x, w, b, *, tile_s, tile_v=1024, out_dtype=jnp.float32):
    B, S, E = x.shape
    V = w.shape[1]
    tile_s = min(tile_s, S)
    # Pad vocab to a lane-dense multiple of 128 (and of tile_v) so logits
    # stores are unmasked vst and no ragged last tile exists.
    Vp = _round_up(V, 128)
    tile_v = _round_up(min(tile_v, Vp), 128)
    Vp = _round_up(Vp, tile_v)
    if Vp != V:
        w = jnp.pad(w, ((0, 0), (0, Vp - V)))
        b = jnp.pad(b, ((0, 0), (0, Vp - V)))

    logits = pl.pallas_call(
        lm_head_kernel,
        out_shape=jax.ShapeDtypeStruct((B, S, Vp), out_dtype),
        # Seq axis innermost: the (E, tile_v) weight slab stays resident across
        # all seq tiles instead of being re-streamed from HBM per (b, s-tile).
        grid=(B, Vp // tile_v, pl.cdiv(S, tile_s)),
        in_specs=[pl.BlockSpec((1, tile_s, E), lambda bb, j, i: (bb, i, 0)),
                  pl.BlockSpec((E, tile_v), lambda bb, j, i: (0, j)),
                  pl.BlockSpec((1, tile_v), lambda bb, j, i: (0, j))],
        out_specs=pl.BlockSpec((1, tile_s, tile_v), lambda bb, j, i: (bb, i, j)),
        compiler_params=pltpu.CompilerParams(
            dimension_semantics=("parallel", "parallel", "parallel"),
            vmem_limit_bytes=_vmem_limit_bytes()),
    )(x, w, b)
    return logits[..., :V] if Vp != V else logits


# ------------------------------ full forward ---------------------------------
def gpt2_forward(params, tokens, num_heads, *, tile_s=None):
    if tile_s is None:
        tile_s = _default_tile_s()
    S = tokens.shape[1]
    # Embedding lookup (XLA glue): token gather + position slice + add.
    h = jnp.take(params['wte'], tokens, axis=0) + params['wpe'][None, :S, :]
    for blk in params['blocks']:
        h = run_transformer_block(h, blk, num_heads, tile_s=tile_s)
    return run_lm_head(h, params['lm_w'], params['lm_b'], tile_s=tile_s)


# ---------------- pure-JAX reference (same bf16 matmul policy) ----------------
def gpt2_reference(params, tokens, num_heads):
    S = tokens.shape[1]
    h = jnp.take(params['wte'], tokens, axis=0) + params['wpe'][None, :S, :]
    B, _, E = h.shape
    hd = E // num_heads
    scale = 1.0 / math.sqrt(hd)

    def split(t):  # (B,S,E) -> (B,H,S,hd)
        return t.reshape(B, S, num_heads, hd).transpose(0, 2, 1, 3)

    for p in params['blocks']:
        q = split((_mm(h, p['wq']) + p['bq']) * scale)
        k = split(_mm(h, p['wk']) + p['bk'])
        v = split(_mm(h, p['wv']) + p['bv'])
        s = _bmm('bhqd,bhkd->bhqk', q, k)
        w = jax.nn.softmax(s, axis=-1)
        attn = _bmm('bhqk,bhkd->bhqd', w, v)
        attn = attn.transpose(0, 2, 1, 3).reshape(B, S, E)
        attn = _mm(attn, p['wo']) + p['bo']
        y = _layernorm(h + attn, p['ln1_g'], p['ln1_b'])
        ffn = _mm(jnp.maximum(_mm(y, p['w1']) + p['b1'], 0.0), p['w2']) + p['b2']
        h = _layernorm(y + ffn, p['ln2_g'], p['ln2_b'])
    return _mm(h, params['lm_w']) + params['lm_b']


# ---------------------------- parameter init ----------------------------------
def init_params(key, vocab, E, hidden, layers, max_seq):
    keys = jax.random.split(key, 4 + layers)

    def dense(k, fan_in, fan_out):
        kw, kb = jax.random.split(k)
        w = jax.random.normal(kw, (fan_in, fan_out), jnp.float32) * 0.02
        b = jax.random.normal(kb, (1, fan_out), jnp.float32) * 0.02
        # Weight matrices live in bf16 at rest (MXU-native, half the DMA/VMEM);
        # biases / LN params / accumulations stay f32.
        return w.astype(MATMUL_DTYPE), b

    lm_w, lm_b = dense(keys[2], E, vocab)
    params = {
        'wte': jax.random.normal(keys[0], (vocab, E), jnp.float32) * 0.02,
        'wpe': jax.random.normal(keys[1], (max_seq, E), jnp.float32) * 0.02,
        'lm_w': lm_w, 'lm_b': lm_b,
        'blocks': [],
    }
    for l in range(layers):
        bk = jax.random.split(keys[4 + l], 6)
        wq, bq = dense(bk[0], E, E)
        wk, bkk = dense(bk[1], E, E)
        wv, bv = dense(bk[2], E, E)
        wo, bo = dense(bk[3], E, E)
        w1, b1 = dense(bk[4], E, hidden)
        w2, b2 = dense(bk[5], hidden, E)
        params['blocks'].append({
            'wq': wq, 'bq': bq, 'wk': wk, 'bk': bkk, 'wv': wv, 'bv': bv,
            'wo': wo, 'bo': bo,
            'ln1_g': jnp.ones((1, E), jnp.float32),
            'ln1_b': jnp.zeros((1, E), jnp.float32),
            'w1': w1, 'b1': b1, 'w2': w2, 'b2': b2,
            'ln2_g': jnp.ones((1, E), jnp.float32),
            'ln2_b': jnp.zeros((1, E), jnp.float32),
        })
    return params


if __name__ == "__main__":
    vocab_size, embed_dim, num_heads = 64, 32, 4
    hidden_dim, num_layers, max_seq_len = 64, 2, 16
    B, S = 2, 8

    key = jax.random.PRNGKey(0)
    pkey, tkey = jax.random.split(key)
    params = init_params(pkey, vocab_size, embed_dim, hidden_dim,
                         num_layers, max_seq_len)
    tokens = jax.random.randint(tkey, (B, S), 0, vocab_size, dtype=jnp.int32)

    logits = gpt2_forward(params, tokens, num_heads)
    logits = jax.block_until_ready(logits)

    ref = gpt2_reference(params, tokens, num_heads)
    assert logits.shape == (B, S, vocab_size), logits.shape
    max_err = float(jnp.max(jnp.abs(logits - ref)))
    # The reference uses the same bf16-operand / f32-accumulate matmul policy;
    # the only intentional deviation is the EUP approx reciprocal in softmax.
    assert jnp.allclose(logits, ref, atol=2e-2, rtol=2e-2), max_err

    print("KERNEL_OK")
</pallas_src>

<mosaic_0001>
module attributes {stable_mosaic.version = 11 : i64} {
  func.func @qkv_proj_kernel(%arg0: i32, %arg1: i32, %arg2: memref<1x8x32xf32, #tpu.memory_space<vmem>>, %arg3: memref<32x32xbf16, #tpu.memory_space<vmem>>, %arg4: memref<1x32xf32, #tpu.memory_space<vmem>>, %arg5: memref<32x32xbf16, #tpu.memory_space<vmem>>, %arg6: memref<1x32xf32, #tpu.memory_space<vmem>>, %arg7: memref<32x32xbf16, #tpu.memory_space<vmem>>, %arg8: memref<1x32xf32, #tpu.memory_space<vmem>>, %arg9: memref<1x4x8x8xf32, #tpu.memory_space<vmem>>, %arg10: memref<1x4x8x8xf32, #tpu.memory_space<vmem>>, %arg11: memref<1x4x8x8xf32, #tpu.memory_space<vmem>>) attributes {dimension_semantics = [#tpu.dimension_semantics<parallel>, #tpu.dimension_semantics<parallel>], iteration_bounds = array<i64: 2, 1>, scalar_prefetch = 0 : i64, scratch_operands = 0 : i64, tpu.core_type = #tpu.core_type<tc>, window_params = [{transform_indices = @transform_0, window_bounds = array<i64: 1, 8, 32>}, {pipeline_mode = #tpu.pipeline_mode<synchronous>, transform_indices = @transform_1, window_bounds = array<i64: 32, 32>}, {pipeline_mode = #tpu.pipeline_mode<synchronous>, transform_indices = @transform_2, window_bounds = array<i64: 1, 32>}, {pipeline_mode = #tpu.pipeline_mode<synchronous>, transform_indices = @transform_3, window_bounds = array<i64: 32, 32>}, {pipeline_mode = #tpu.pipeline_mode<synchronous>, transform_indices = @transform_4, window_bounds = array<i64: 1, 32>}, {pipeline_mode = #tpu.pipeline_mode<synchronous>, transform_indices = @transform_5, window_bounds = array<i64: 32, 32>}, {pipeline_mode = #tpu.pipeline_mode<synchronous>, transform_indices = @transform_6, window_bounds = array<i64: 1, 32>}, {transform_indices = @transform_7, window_bounds = array<i64: 1, 4, 8, 8>}, {transform_indices = @transform_8, window_bounds = array<i64: 1, 4, 8, 8>}, {transform_indices = @transform_9, window_bounds = array<i64: 1, 4, 8, 8>}]} {
    %c0 = arith.constant 0 : index
    %c0_0 = arith.constant 0 : index
    %c0_1 = arith.constant 0 : index
    %0 = vector.load %arg2[%c0, %c0_0, %c0_1] : memref<1x8x32xf32, #tpu.memory_space<vmem>>, vector<1x8x32xf32>
    %1 = vector.shape_cast %0 : vector<1x8x32xf32> to vector<8x32xf32>
    %c0_2 = arith.constant 0 : index
    %c0_3 = arith.constant 0 : index
    %2 = vector.load %arg3[%c0_2, %c0_3] : memref<32x32xbf16, #tpu.memory_space<vmem>>, vector<32x32xbf16>
    %3 = arith.truncf %1 : vector<8x32xf32> to vector<8x32xbf16>
    %cst = arith.constant dense<0.000000e+00> : vector<8x32xf32>
    %4 = tpu.matmul %3, %2, %cst {dimension_numbers = #tpu.dot_dimension_numbers<[1], [0], [0], [1], [0, 0, 1, 1], [], []>} : vector<8x32xbf16>, vector<32x32xbf16>, vector<8x32xf32> -> vector<8x32xf32>
    %c0_4 = arith.constant 0 : index
    %c0_5 = arith.constant 0 : index
    %5 = vector.load %arg4[%c0_4, %c0_5] : memref<1x32xf32, #tpu.memory_space<vmem>>, vector<1x32xf32>
    %6 = vector.broadcast %5 : vector<1x32xf32> to vector<8x32xf32>
    %7 = arith.addf %4, %6 : vector<8x32xf32>
    %cst_6 = arith.constant 0.353553385 : f32
    %8 = vector.broadcast %cst_6 : f32 to vector<8x32xf32>
    %9 = arith.mulf %7, %8 : vector<8x32xf32>
    %c0_7 = arith.constant 0 : index
    %c0_8 = arith.constant 0 : index
    %10 = vector.load %arg5[%c0_7, %c0_8] : memref<32x32xbf16, #tpu.memory_space<vmem>>, vector<32x32xbf16>
    %11 = arith.truncf %1 : vector<8x32xf32> to vector<8x32xbf16>
    %cst_9 = arith.constant dense<0.000000e+00> : vector<8x32xf32>
    %12 = tpu.matmul %11, %10, %cst_9 {dimension_numbers = #tpu.dot_dimension_numbers<[1], [0], [0], [1], [0, 0, 1, 1], [], []>} : vector<8x32xbf16>, vector<32x32xbf16>, vector<8x32xf32> -> vector<8x32xf32>
    %c0_10 = arith.constant 0 : index
    %c0_11 = arith.constant 0 : index
    %13 = vector.load %arg6[%c0_10, %c0_11] : memref<1x32xf32, #tpu.memory_space<vmem>>, vector<1x32xf32>
    %14 = vector.broadcast %13 : vector<1x32xf32> to vector<8x32xf32>
    %15 = arith.addf %12, %14 : vector<8x32xf32>
    %c0_12 = arith.constant 0 : index
    %c0_13 = arith.constant 0 : index
    %16 = vector.load %arg7[%c0_12, %c0_13] : memref<32x32xbf16, #tpu.memory_space<vmem>>, vector<32x32xbf16>
    %17 = arith.truncf %1 : vector<8x32xf32> to vector<8x32xbf16>
    %cst_14 = arith.constant dense<0.000000e+00> : vector<8x32xf32>
    %18 = tpu.matmul %17, %16, %cst_14 {dimension_numbers = #tpu.dot_dimension_numbers<[1], [0], [0], [1], [0, 0, 1, 1], [], []>} : vector<8x32xbf16>, vector<32x32xbf16>, vector<8x32xf32> -> vector<8x32xf32>
    %c0_15 = arith.constant 0 : index
    %c0_16 = arith.constant 0 : index
    %19 = vector.load %arg8[%c0_15, %c0_16] : memref<1x32xf32, #tpu.memory_space<vmem>>, vector<1x32xf32>
    %20 = vector.broadcast %19 : vector<1x32xf32> to vector<8x32xf32>
    %21 = arith.addf %18, %20 : vector<8x32xf32>
    %22 = vector.extract_strided_slice %9 {offsets = [0, 0], sizes = [8, 8], strides = [1, 1]} : vector<8x32xf32> to vector<8x8xf32>
    %c0_17 = arith.constant 0 : index
    %c0_18 = arith.constant 0 : index
    %c0_19 = arith.constant 0 : index
    %c0_20 = arith.constant 0 : index
    %23 = vector.load %arg9[%c0_17, %c0_18, %c0_19, %c0_20] : memref<1x4x8x8xf32, #tpu.memory_space<vmem>>, vector<1x1x8x8xf32>
    %24 = vector.shape_cast %23 : vector<1x1x8x8xf32> to vector<8x8xf32>
    %25 = vector.shape_cast %22 : vector<8x8xf32> to vector<1x1x8x8xf32>
    tpu.vector_store %arg9[%c0_17, %c0_18, %c0_19, %c0_20], %25 {strides = array<i32>} : memref<1x4x8x8xf32, #tpu.memory_space<vmem>>, vector<1x1x8x8xf32>,
    %26 = vector.extract_strided_slice %15 {offsets = [0, 0], sizes = [8, 8], strides = [1, 1]} : vector<8x32xf32> to vector<8x8xf32>
    %c0_21 = arith.constant 0 : index
    %c0_22 = arith.constant 0 : index
    %c0_23 = arith.constant 0 : index
    %c0_24 = arith.constant 0 : index
    %27 = vector.load %arg10[%c0_21, %c0_22, %c0_23, %c0_24] : memref<1x4x8x8xf32, #tpu.memory_space<vmem>>, vector<1x1x8x8xf32>
    %28 = vector.shape_cast %27 : vector<1x1x8x8xf32> to vector<8x8xf32>
    %29 = vector.shape_cast %26 : vector<8x8xf32> to vector<1x1x8x8xf32>
    tpu.vector_store %arg10[%c0_21, %c0_22, %c0_23, %c0_24], %29 {strides = array<i32>} : memref<1x4x8x8xf32, #tpu.memory_space<vmem>>, vector<1x1x8x8xf32>,
    %30 = vector.extract_strided_slice %21 {offsets = [0, 0], sizes = [8, 8], strides = [1, 1]} : vector<8x32xf32> to vector<8x8xf32>
    %c0_25 = arith.constant 0 : index
    %c0_26 = arith.constant 0 : index
    %c0_27 = arith.constant 0 : index
    %c0_28 = arith.constant 0 : index
    %31 = vector.load %arg11[%c0_25, %c0_26, %c0_27, %c0_28] : memref<1x4x8x8xf32, #tpu.memory_space<vmem>>, vector<1x1x8x8xf32>
    %32 = vector.shape_cast %31 : vector<1x1x8x8xf32> to vector<8x8xf32>
    %33 = vector.shape_cast %30 : vector<8x8xf32> to vector<1x1x8x8xf32>
    tpu.vector_store %arg11[%c0_25, %c0_26, %c0_27, %c0_28], %33 {strides = array<i32>} : memref<1x4x8x8xf32, #tpu.memory_space<vmem>>, vector<1x1x8x8xf32>,
    %34 = vector.extract_strided_slice %9 {offsets = [0, 8], sizes = [8, 8], strides = [1, 1]} : vector<8x32xf32> to vector<8x8xf32>
    %c0_29 = arith.constant 0 : index
    %c1 = arith.constant 1 : index
    %c0_30 = arith.constant 0 : index
    %c0_31 = arith.constant 0 : index
    %35 = vector.load %arg9[%c0_29, %c1, %c0_30, %c0_31] : memref<1x4x8x8xf32, #tpu.memory_space<vmem>>, vector<1x1x8x8xf32>
    %36 = vector.shape_cast %35 : vector<1x1x8x8xf32> to vector<8x8xf32>
    %37 = vector.shape_cast %34 : vector<8x8xf32> to vector<1x1x8x8xf32>
    tpu.vector_store %arg9[%c0_29, %c1, %c0_30, %c0_31], %37 {strides = array<i32>} : memref<1x4x8x8xf32, #tpu.memory_space<vmem>>, vector<1x1x8x8xf32>,
    %38 = vector.extract_strided_slice %15 {offsets = [0, 8], sizes = [8, 8], strides = [1, 1]} : vector<8x32xf32> to vector<8x8xf32>
    %c0_32 = arith.constant 0 : index
    %c1_33 = arith.constant 1 : index
    %c0_34 = arith.constant 0 : index
    %c0_35 = arith.constant 0 : index
    %39 = vector.load %arg10[%c0_32, %c1_33, %c0_34, %c0_35] : memref<1x4x8x8xf32, #tpu.memory_space<vmem>>, vector<1x1x8x8xf32>
    %40 = vector.shape_cast %39 : vector<1x1x8x8xf32> to vector<8x8xf32>
    %41 = vector.shape_cast %38 : vector<8x8xf32> to vector<1x1x8x8xf32>
    tpu.vector_store %arg10[%c0_32, %c1_33, %c0_34, %c0_35], %41 {strides = array<i32>} : memref<1x4x8x8xf32, #tpu.memory_space<vmem>>, vector<1x1x8x8xf32>,
    %42 = vector.extract_strided_slice %21 {offsets = [0, 8], sizes = [8, 8], strides = [1, 1]} : vector<8x32xf32> to vector<8x8xf32>
    %c0_36 = arith.constant 0 : index
    %c1_37 = arith.constant 1 : index
    %c0_38 = arith.constant 0 : index
    %c0_39 = arith.constant 0 : index
    %43 = vector.load %arg11[%c0_36, %c1_37, %c0_38, %c0_39] : memref<1x4x8x8xf32, #tpu.memory_space<vmem>>, vector<1x1x8x8xf32>
    %44 = vector.shape_cast %43 : vector<1x1x8x8xf32> to vector<8x8xf32>
    %45 = vector.shape_cast %42 : vector<8x8xf32> to vector<1x1x8x8xf32>
    tpu.vector_store %arg11[%c0_36, %c1_37, %c0_38, %c0_39], %45 {strides = array<i32>} : memref<1x4x8x8xf32, #tpu.memory_space<vmem>>, vector<1x1x8x8xf32>,
    %46 = vector.extract_strided_slice %9 {offsets = [0, 16], sizes = [8, 8], strides = [1, 1]} : vector<8x32xf32> to vector<8x8xf32>
    %c0_40 = arith.constant 0 : index
    %c2 = arith.constant 2 : index
    %c0_41 = arith.constant 0 : index
    %c0_42 = arith.constant 0 : index
    %47 = vector.load %arg9[%c0_40, %c2, %c0_41, %c0_42] : memref<1x4x8x8xf32, #tpu.memory_space<vmem>>, vector<1x1x8x8xf32>
    %48 = vector.shape_cast %47 : vector<1x1x8x8xf32> to vector<8x8xf32>
    %49 = vector.shape_cast %46 : vector<8x8xf32> to vector<1x1x8x8xf32>
    tpu.vector_store %arg9[%c0_40, %c2, %c0_41, %c0_42], %49 {strides = array<i32>} : memref<1x4x8x8xf32, #tpu.memory_space<vmem>>, vector<1x1x8x8xf32>,
    %50 = vector.extract_strided_slice %15 {offsets = [0, 16], sizes = [8, 8], strides = [1, 1]} : vector<8x32xf32> to vector<8x8xf32>
    %c0_43 = arith.constant 0 : index
    %c2_44 = arith.constant 2 : index
    %c0_45 = arith.constant 0 : index
    %c0_46 = arith.constant 0 : index
    %51 = vector.load %arg10[%c0_43, %c2_44, %c0_45, %c0_46] : memref<1x4x8x8xf32, #tpu.memory_space<vmem>>, vector<1x1x8x8xf32>
    %52 = vector.shape_cast %51 : vector<1x1x8x8xf32> to vector<8x8xf32>
    %53 = vector.shape_cast %50 : vector<8x8xf32> to vector<1x1x8x8xf32>
    tpu.vector_store %arg10[%c0_43, %c2_44, %c0_45, %c0_46], %53 {strides = array<i32>} : memref<1x4x8x8xf32, #tpu.memory_space<vmem>>, vector<1x1x8x8xf32>,
    %54 = vector.extract_strided_slice %21 {offsets = [0, 16], sizes = [8, 8], strides = [1, 1]} : vector<8x32xf32> to vector<8x8xf32>
    %c0_47 = arith.constant 0 : index
    %c2_48 = arith.constant 2 : index
    %c0_49 = arith.constant 0 : index
    %c0_50 = arith.constant 0 : index
    %55 = vector.load %arg11[%c0_47, %c2_48, %c0_49, %c0_50] : memref<1x4x8x8xf32, #tpu.memory_space<vmem>>, vector<1x1x8x8xf32>
    %56 = vector.shape_cast %55 : vector<1x1x8x8xf32> to vector<8x8xf32>
    %57 = vector.shape_cast %54 : vector<8x8xf32> to vector<1x1x8x8xf32>
    tpu.vector_store %arg11[%c0_47, %c2_48, %c0_49, %c0_50], %57 {strides = array<i32>} : memref<1x4x8x8xf32, #tpu.memory_space<vmem>>, vector<1x1x8x8xf32>,
    %58 = vector.extract_strided_slice %9 {offsets = [0, 24], sizes = [8, 8], strides = [1, 1]} : vector<8x32xf32> to vector<8x8xf32>
    %c0_51 = arith.constant 0 : index
    %c3 = arith.constant 3 : index
    %c0_52 = arith.constant 0 : index
    %c0_53 = arith.constant 0 : index
    %59 = vector.load %arg9[%c0_51, %c3, %c0_52, %c0_53] : memref<1x4x8x8xf32, #tpu.memory_space<vmem>>, vector<1x1x8x8xf32>
    %60 = vector.shape_cast %59 : vector<1x1x8x8xf32> to vector<8x8xf32>
    %61 = vector.shape_cast %58 : vector<8x8xf32> to vector<1x1x8x8xf32>
    tpu.vector_store %arg9[%c0_51, %c3, %c0_52, %c0_53], %61 {strides = array<i32>} : memref<1x4x8x8xf32, #tpu.memory_space<vmem>>, vector<1x1x8x8xf32>,
    %62 = vector.extract_strided_slice %15 {offsets = [0, 24], sizes = [8, 8], strides = [1, 1]} : vector<8x32xf32> to vector<8x8xf32>
    %c0_54 = arith.constant 0 : index
    %c3_55 = arith.constant 3 : index
    %c0_56 = arith.constant 0 : index
    %c0_57 = arith.constant 0 : index
    %63 = vector.load %arg10[%c0_54, %c3_55, %c0_56, %c0_57] : memref<1x4x8x8xf32, #tpu.memory_space<vmem>>, vector<1x1x8x8xf32>
    %64 = vector.shape_cast %63 : vector<1x1x8x8xf32> to vector<8x8xf32>
    %65 = vector.shape_cast %62 : vector<8x8xf32> to vector<1x1x8x8xf32>
    tpu.vector_store %arg10[%c0_54, %c3_55, %c0_56, %c0_57], %65 {strides = array<i32>} : memref<1x4x8x8xf32, #tpu.memory_space<vmem>>, vector<1x1x8x8xf32>,
    %66 = vector.extract_strided_slice %21 {offsets = [0, 24], sizes = [8, 8], strides = [1, 1]} : vector<8x32xf32> to vector<8x8xf32>
    %c0_58 = arith.constant 0 : index
    %c3_59 = arith.constant 3 : index
    %c0_60 = arith.constant 0 : index
    %c0_61 = arith.constant 0 : index
    %67 = vector.load %arg11[%c0_58, %c3_59, %c0_60, %c0_61] : memref<1x4x8x8xf32, #tpu.memory_space<vmem>>, vector<1x1x8x8xf32>
    %68 = vector.shape_cast %67 : vector<1x1x8x8xf32> to vector<8x8xf32>
    %69 = vector.shape_cast %66 : vector<8x8xf32> to vector<1x1x8x8xf32>
    tpu.vector_store %arg11[%c0_58, %c3_59, %c0_60, %c0_61], %69 {strides = array<i32>} : memref<1x4x8x8xf32, #tpu.memory_space<vmem>>, vector<1x1x8x8xf32>,
    return
  }
  func.func @transform_0(%arg0: i32, %arg1: i32) -> (i32, i32, i32) {
    %c0_i32 = arith.constant 0 : i32
    %c0_i32_0 = arith.constant 0 : i32
    return %arg0, %arg1, %c0_i32 : i32, i32, i32
  }
  func.func @transform_1(%arg0: i32, %arg1: i32) -> (i32, i32) {
    %c0_i32 = arith.constant 0 : i32
    %c0_i32_0 = arith.constant 0 : i32
    %c0_i32_1 = arith.constant 0 : i32
    return %c0_i32, %c0_i32_0 : i32, i32
  }
  func.func @transform_2(%arg0: i32, %arg1: i32) -> (i32, i32) {
    %c0_i32 = arith.constant 0 : i32
    %c0_i32_0 = arith.constant 0 : i32
    %c0_i32_1 = arith.constant 0 : i32
    return %c0_i32, %c0_i32_0 : i32, i32
  }
  func.func @transform_3(%arg0: i32, %arg1: i32) -> (i32, i32) {
    %c0_i32 = arith.constant 0 : i32
    %c0_i32_0 = arith.constant 0 : i32
    %c0_i32_1 = arith.constant 0 : i32
    return %c0_i32, %c0_i32_0 : i32, i32
  }
  func.func @transform_4(%arg0: i32, %arg1: i32) -> (i32, i32) {
    %c0_i32 = arith.constant 0 : i32
    %c0_i32_0 = arith.constant 0 : i32
    %c0_i32_1 = arith.constant 0 : i32
    return %c0_i32, %c0_i32_0 : i32, i32
  }
  func.func @transform_5(%arg0: i32, %arg1: i32) -> (i32, i32) {
    %c0_i32 = arith.constant 0 : i32
    %c0_i32_0 = arith.constant 0 : i32
    %c0_i32_1 = arith.constant 0 : i32
    return %c0_i32, %c0_i32_0 : i32, i32
  }
  func.func @transform_6(%arg0: i32, %arg1: i32) -> (i32, i32) {
    %c0_i32 = arith.constant 0 : i32
    %c0_i32_0 = arith.constant 0 : i32
    %c0_i32_1 = arith.constant 0 : i32
    return %c0_i32, %c0_i32_0 : i32, i32
  }
  func.func @transform_7(%arg0: i32, %arg1: i32) -> (i32, i32, i32, i32) {
    %c0_i32 = arith.constant 0 : i32
    %c0_i32_0 = arith.constant 0 : i32
    %c0_i32_1 = arith.constant 0 : i32
    return %arg0, %c0_i32, %arg1, %c0_i32_0 : i32, i32, i32, i32
  }
  func.func @transform_8(%arg0: i32, %arg1: i32) -> (i32, i32, i32, i32) {
    %c0_i32 = arith.constant 0 : i32
    %c0_i32_0 = arith.constant 0 : i32
    %c0_i32_1 = arith.constant 0 : i32
    return %arg0, %c0_i32, %arg1, %c0_i32_0 : i32, i32, i32, i32
  }
  func.func @transform_9(%arg0: i32, %arg1: i32) -> (i32, i32, i32, i32) {
    %c0_i32 = arith.constant 0 : i32
    %c0_i32_0 = arith.constant 0 : i32
    %c0_i32_1 = arith.constant 0 : i32
    return %arg0, %c0_i32, %arg1, %c0_i32_0 : i32, i32, i32, i32
  }
}

</mosaic_0001>

<llo_original>
// kernel: tpu_custom_call.1
$region0: #{tpu_custom_call.1}
  #allocation0 [shape = 'u32[]', space=smem, size = 0x4, offset = 0x4, fixed_abs, tag = 'smem constant byte address 0x4 - core index']
  #allocation1 [shape = 'u32[72,128]{1,0:T(1,128)}', space=vmem, size = 0x9000, scoped, tag = 'internal scratch']
  %s0 = inlined_call_operand.hbm [shape: f32[2,8,32], index: 0, kind: input, shape index: {}]
  %s1 = inlined_call_operand.hbm [shape: bf16[32,32], index: 1, kind: input, shape index: {}]
  %s2 = inlined_call_operand.vmem [shape: f32[1,32], index: 2, kind: input, shape index: {}]
  %s3 = inlined_call_operand.hbm [shape: bf16[32,32], index: 3, kind: input, shape index: {}]
  %s4 = inlined_call_operand.vmem [shape: f32[1,32], index: 4, kind: input, shape index: {}]
  %s5 = inlined_call_operand.hbm [shape: bf16[32,32], index: 5, kind: input, shape index: {}]
  %s6 = inlined_call_operand.vmem [shape: f32[1,32], index: 6, kind: input, shape index: {}]
  %s7 = inlined_call_operand.hbm [shape: f32[2,4,8,8], index: 7, kind: output, shape index: {0}]
  %s8 = inlined_call_operand.hbm [shape: f32[2,4,8,8], index: 8, kind: output, shape index: {1}]
  %s9 = inlined_call_operand.hbm [shape: f32[2,4,8,8], index: 9, kind: output, shape index: {2}]
  %10 = xla_tuple %s7, %s8, %s9
  %s11 = sld [smem:[#allocation0]]
  $region93: #{tpu_custom_call.1} parent=0
    _
  %s13 = ssub.s32 1, %s11
  %s14 = scalar_select 0, %s13, %s11
  $region1: #{tpu_custom_call.1} parent=0
    #allocation2 [shape = 'u8[8192]{0}', space=vmem, size = 0x2000, scoped, tag = 'input window, operand 0']
    #allocation3 [shape = 's32[2]{0}', space=sflag, size = 0x8, scoped, tag = 'scoped memory for tpu_custom_call.1']
    #allocation4 [shape = 's32[2]{0}', space=sflag, size = 0x8, scoped, tag = 'scoped memory for tpu_custom_call.1']
    #allocation5 [shape = 'u8[8192]{0}', space=vmem, size = 0x2000, scoped, tag = 'input window, operand 1, single buffered']
    #allocation6 [shape = 's32[1]{0}', space=sflag, size = 0x4, scoped, tag = 'scoped memory for tpu_custom_call.1']
    #allocation7 [shape = 'u8[8192]{0}', space=vmem, size = 0x2000, scoped, tag = 'input window, operand 3, single buffered']
    #allocation8 [shape = 'u8[8192]{0}', space=vmem, size = 0x2000, scoped, tag = 'input window, operand 5, single buffered']
    #allocation9 [shape = 's32[1]{0}', space=sflag, size = 0x4, scoped, tag = 'scoped memory for tpu_custom_call.1']
    #allocation10 [shape = 'u8[32768]{0}', space=vmem, size = 0x8000, scoped, tag = 'output window, operand 0']
    #allocation11 [shape = 'u8[32768]{0}', space=vmem, size = 0x8000, scoped, tag = 'output window, operand 1']
    #allocation12 [shape = 's32[2]{0}', space=sflag, size = 0x8, scoped, tag = 'scoped memory for tpu_custom_call.1']
    #allocation13 [shape = 'u8[32768]{0}', space=vmem, size = 0x8000, scoped, tag = 'output window, operand 2']
    %15 = vsyncpa [#allocation3], 0
    %s16 = scalar_lea.sflag [#allocation3], 1
    %17 = vsyncpa %s16, 0
    %18 = vsyncpa [#allocation6], 0
    %19 = vsyncpa [#allocation9], 0
    %20 = vsyncpa [#allocation4], 0
    %s21 = scalar_lea.sflag [#allocation4], 1
    %22 = vsyncpa %s21, 0
    %23 = vsyncpa [#allocation12], 0
    %s24 = scalar_lea.sflag [#allocation12], 1
    %25 = vsyncpa %s24, 0
    loop: start=0, step=1, limit=4
    $region2: #{tpu_custom_call.1} parent=1 // loop_pre_header
      _
    $region3: #{tpu_custom_call.1} parent=1 // loop_header
      %s27 = sphi 0, %s31
      %p28 = scmp.ge.s32.totalorder %s27, 4
      %s34 = sphi 0, %s46
      %s35 = sphi 0, %s42
      %s36 = sphi 0, %s34
      %s37 = sphi 0, %s35
      %s38 = sphi 0, %s36
      %s39 = sphi 0, %s37
      %s51 = sphi 0, %s53
      %s54 = sphi 0, %s51
      %s55 = sphi 0, %s54
      %s71 = sphi 0, %s55
      %s75 = sphi 0, %s75
      %s77 = sphi 0, %s75
      %s78 = sphi 0, %s77
      %s92 = sphi 0, %s78
      %s96 = sphi 0, %s96
      %s98 = sphi 0, %s96
      %s99 = sphi 0, %s98
      %s113 = sphi 0, %s99
      %s117 = sphi 0, %s117
      %s119 = sphi 0, %s117
      %s120 = sphi 0, %s119
      %s134 = sphi 0, %s120
      %s138 = sphi 0, %s138
      %s140 = sphi 0, %s138
      %s141 = sphi 0, %s140
      %s155 = sphi 0, %s141
      %s159 = sphi 0, %s159
      %s161 = sphi 0, %s159
      %s162 = sphi 0, %s161
      %s176 = sphi 0, %s162
      %s180 = sphi 0, %s180
      %s182 = sphi 0, %s180
      %s183 = sphi 0, %s182
      %s197 = sphi 0, %s183
      %s205 = sphi 0, %s207
      %s208 = sphi 0, %s205
      %s209 = sphi 0, %s208
      %s225 = sphi 0, %s209
      %s233 = sphi 0, %s235
      %s236 = sphi 0, %s233
      %s237 = sphi 0, %s236
      %s253 = sphi 0, %s237
      %s261 = sphi 0, %s263
      %s264 = sphi 0, %s261
      %s265 = sphi 0, %s264
      %s281 = sphi 0, %s265
    $region4: #{tpu_custom_call.1} parent=1 // loop_header_branch
      %30 = sbr.rel (%p28) target = $region8
    $region5: #{tpu_custom_call.1} parent=1 // loop_body
      %s32 = ssub.s32 %s27, 1
      %s33 = ssub.s32 %s27, 2
      %s40 = sadd.s32 1, %s35
      %p41 = scmp.ge.s32.totalorder %s40, 1
      %s42 = scalar_select %p41, 0, %s40
      %s43 = sadd.s32 1, %s34
      %s44 = scalar_select %p41, %s43, %s34
      %p45 = scmp.ge.s32.totalorder %s44, 2
      %s46 = scalar_select %p45, 0, %s44
      %s47 = ssub.s32 %s34, %s46
      %s48 = ssub.s32 %s35, %s42
      %s49 = sor.u32 %s47, %s48
      %p50 = scmp.eq.s32.totalorder %s49, 0
      %s52 = sadd.s32 %s51, 1
      %s53 = scalar_select %p50, %s51, %s52
      %p56 = pneg %p50
      %p57 = scmp.eq.s32.totalorder %s27, 1
      %p58 = por %p56, %p57
      %p59 = scmp.ne.s32.totalorder %s51, %s54
      %p60 = scmp.eq.s32.totalorder %s27, 0
      %p61 = por %p59, %p60
      %p62 = scmp.ne.s32.totalorder %s51, %s54
      %p63 = scmp.eq.s32.totalorder %s32, 1
      %p64 = por %p62, %p63
      %p65 = scmp.ne.s32.totalorder %s54, %s55
      %p66 = scmp.eq.s32.totalorder %s32, 0
      %p67 = por %p65, %p66
      %p68 = scmp.ne.s32.totalorder %s54, %s55
      %p69 = scmp.eq.s32.totalorder %s33, 1
      %p70 = por %p68, %p69
      %p72 = scmp.ne.s32.totalorder %s55, %s71
      %p73 = scmp.eq.s32.totalorder %s33, 0
      %p74 = por %p72, %p73
      %s76 = sadd.s32 %s75, 1
      %p79 = scmp.eq.s32.totalorder %s27, 1
      %p80 = scmp.ne.s32.totalorder %s75, %s77
      %p81 = scmp.eq.s32.totalorder %s27, 0
      %p82 = por %p80, %p81
      %p83 = scmp.ne.s32.totalorder %s75, %s77
      %p84 = scmp.eq.s32.totalorder %s32, 1
      %p85 = por %p83, %p84
      %p86 = scmp.ne.s32.totalorder %s77, %s78
      %p87 = scmp.eq.s32.totalorder %s32, 0
      %p88 = por %p86, %p87
      %p89 = scmp.ne.s32.totalorder %s77, %s78
      %p90 = scmp.eq.s32.totalorder %s33, 1
      %p91 = por %p89, %p90
      %p93 = scmp.ne.s32.totalorder %s78, %s92
      %p94 = scmp.eq.s32.totalorder %s33, 0
      %p95 = por %p93, %p94
      %s97 = sadd.s32 %s96, 1
      %p100 = scmp.eq.s32.totalorder %s27, 1
      %p101 = scmp.ne.s32.totalorder %s96, %s98
      %p102 = scmp.eq.s32.totalorder %s27, 0
      %p103 = por %p101, %p102
      %p104 = scmp.ne.s32.totalorder %s96, %s98
      %p105 = scmp.eq.s32.totalorder %s32, 1
      %p106 = por %p104, %p105
      %p107 = scmp.ne.s32.totalorder %s98, %s99
      %p108 = scmp.eq.s32.totalorder %s32, 0
      %p109 = por %p107, %p108
      %p110 = scmp.ne.s32.totalorder %s98, %s99
      %p111 = scmp.eq.s32.totalorder %s33, 1
      %p112 = por %p110, %p111
      %p114 = scmp.ne.s32.totalorder %s99, %s113
      %p115 = scmp.eq.s32.totalorder %s33, 0
      %p116 = por %p114, %p115
      %s118 = sadd.s32 %s117, 1
      %p121 = scmp.eq.s32.totalorder %s27, 1
      %p122 = scmp.ne.s32.totalorder %s117, %s119
      %p123 = scmp.eq.s32.totalorder %s27, 0
      %p124 = por %p122, %p123
      %p125 = scmp.ne.s32.totalorder %s117, %s119
      %p126 = scmp.eq.s32.totalorder %s32, 1
      %p127 = por %p125, %p126
      %p128 = scmp.ne.s32.totalorder %s119, %s120
      %p129 = scmp.eq.s32.totalorder %s32, 0
      %p130 = por %p128, %p129
      %p131 = scmp.ne.s32.totalorder %s119, %s120
      %p132 = scmp.eq.s32.totalorder %s33, 1
      %p133 = por %p131, %p132
      %p135 = scmp.ne.s32.totalorder %s120, %s134
      %p136 = scmp.eq.s32.totalorder %s33, 0
      %p137 = por %p135, %p136
      %s139 = sadd.s32 %s138, 1
      %p142 = scmp.eq.s32.totalorder %s27, 1
      %p143 = scmp.ne.s32.totalorder %s138, %s140
      %p144 = scmp.eq.s32.totalorder %s27, 0
      %p145 = por %p143, %p144
      %p146 = scmp.ne.s32.totalorder %s138, %s140
      %p147 = scmp.eq.s32.totalorder %s32, 1
      %p148 = por %p146, %p147
      %p149 = scmp.ne.s32.totalorder %s140, %s141
      %p150 = scmp.eq.s32.totalorder %s32, 0
      %p151 = por %p149, %p150
      %p152 = scmp.ne.s32.totalorder %s140, %s141
      %p153 = scmp.eq.s32.totalorder %s33, 1
      %p154 = por %p152, %p153
      %p156 = scmp.ne.s32.totalorder %s141, %s155
      %p157 = scmp.eq.s32.totalorder %s33, 0
      %p158 = por %p156, %p157
      %s160 = sadd.s32 %s159, 1
      %p163 = scmp.eq.s32.totalorder %s27, 1
      %p164 = scmp.ne.s32.totalorder %s159, %s161
      %p165 = scmp.eq.s32.totalorder %s27, 0
      %p166 = por %p164, %p165
      %p167 = scmp.ne.s32.totalorder %s159, %s161
      %p168 = scmp.eq.s32.totalorder %s32, 1
      %p169 = por %p167, %p168
      %p170 = scmp.ne.s32.totalorder %s161, %s162
      %p171 = scmp.eq.s32.totalorder %s32, 0
      %p172 = por %p170, %p171
      %p173 = scmp.ne.s32.totalorder %s161, %s162
      %p174 = scmp.eq.s32.totalorder %s33, 1
      %p175 = por %p173, %p174
      %p177 = scmp.ne.s32.totalorder %s162, %s176
      %p178 = scmp.eq.s32.totalorder %s33, 0
      %p179 = por %p177, %p178
      %s181 = sadd.s32 %s180, 1
      %p184 = scmp.eq.s32.totalorder %s27, 1
      %p185 = scmp.ne.s32.totalorder %s180, %s182
      %p186 = scmp.eq.s32.totalorder %s27, 0
      %p187 = por %p185, %p186
      %p188 = scmp.ne.s32.totalorder %s180, %s182
      %p189 = scmp.eq.s32.totalorder %s32, 1
      %p190 = por %p188, %p189
      %p191 = scmp.ne.s32.totalorder %s182, %s183
      %p192 = scmp.eq.s32.totalorder %s32, 0
      %p193 = por %p191, %p192
      %p194 = scmp.ne.s32.totalorder %s182, %s183
      %p195 = scmp.eq.s32.totalorder %s33, 1
      %p196 = por %p194, %p195
      %p198 = scmp.ne.s32.totalorder %s183, %s197
      %p199 = scmp.eq.s32.totalorder %s33, 0
      %p200 = por %p198, %p199
      %s201 = ssub.s32 %s34, %s46
      %s202 = ssub.s32 %s35, %s42
      %s203 = sor.u32 %s201, %s202
      %p204 = scmp.eq.s32.totalorder %s203, 0
      %s206 = sadd.s32 %s205, 1
      %s207 = scalar_select %p204, %s205, %s206
      %p210 = pneg %p204
      %p211 = scmp.eq.s32.totalorder %s27, 1
      %p212 = por %p210, %p211
      %p213 = scmp.ne.s32.totalorder %s205, %s208
      %p214 = scmp.eq.s32.totalorder %s27, 0
      %p215 = por %p213, %p214
      %p216 = scmp.ne.s32.totalorder %s205, %s208
      %p217 = scmp.eq.s32.totalorder %s32, 1
      %p218 = por %p216, %p217
      %p219 = scmp.ne.s32.totalorder %s208, %s209
      %p220 = scmp.eq.s32.totalorder %s32, 0
      %p221 = por %p219, %p220
      %p222 = scmp.ne.s32.totalorder %s208, %s209
      %p223 = scmp.eq.s32.totalorder %s33, 1
      %p224 = por %p222, %p223
      %p226 = scmp.ne.s32.totalorder %s209, %s225
      %p227 = scmp.eq.s32.totalorder %s33, 0
      %p228 = por %p226, %p227
      %s229 = ssub.s32 %s34, %s46
      %s230 = ssub.s32 %s35, %s42
      %s231 = sor.u32 %s229, %s230
      %p232 = scmp.eq.s32.totalorder %s231, 0
      %s234 = sadd.s32 %s233, 1
      %s235 = scalar_select %p232, %s233, %s234
      %p238 = pneg %p232
      %p239 = scmp.eq.s32.totalorder %s27, 1
      %p240 = por %p238, %p239
      %p241 = scmp.ne.s32.totalorder %s233, %s236
      %p242 = scmp.eq.s32.totalorder %s27, 0
      %p243 = por %p241, %p242
      %p244 = scmp.ne.s32.totalorder %s233, %s236
      %p245 = scmp.eq.s32.totalorder %s32, 1
      %p246 = por %p244, %p245
      %p247 = scmp.ne.s32.totalorder %s236, %s237
      %p248 = scmp.eq.s32.totalorder %s32, 0
      %p249 = por %p247, %p248
      %p250 = scmp.ne.s32.totalorder %s236, %s237
      %p251 = scmp.eq.s32.totalorder %s33, 1
      %p252 = por %p250, %p251
      %p254 = scmp.ne.s32.totalorder %s237, %s253
      %p255 = scmp.eq.s32.totalorder %s33, 0
      %p256 = por %p254, %p255
      %s257 = ssub.s32 %s34, %s46
      %s258 = ssub.s32 %s35, %s42
      %s259 = sor.u32 %s257, %s258
      %p260 = scmp.eq.s32.totalorder %s259, 0
      %s262 = sadd.s32 %s261, 1
      %s263 = scalar_select %p260, %s261, %s262
      %p266 = pneg %p260
      %p267 = scmp.eq.s32.totalorder %s27, 1
      %p268 = por %p266, %p267
      %p269 = scmp.ne.s32.totalorder %s261, %s264
      %p270 = scmp.eq.s32.totalorder %s27, 0
      %p271 = por %p269, %p270
      %p272 = scmp.ne.s32.totalorder %s261, %s264
      %p273 = scmp.eq.s32.totalorder %s32, 1
      %p274 = por %p272, %p273
      %p275 = scmp.ne.s32.totalorder %s264, %s265
      %p276 = scmp.eq.s32.totalorder %s32, 0
      %p277 = por %p275, %p276
      %p278 = scmp.ne.s32.totalorder %s264, %s265
      %p279 = scmp.eq.s32.totalorder %s33, 1
      %p280 = por %p278, %p279
      %p282 = scmp.ne.s32.totalorder %s265, %s281
      %p283 = scmp.eq.s32.totalorder %s33, 0
      %p284 = por %p282, %p283
      %p285 = scmp.le.s32.totalorder 1, %s27
      %p286 = scmp.lt.s32.totalorder %s27, 3
      %p287 = pnand %p285, %p286
      %p288 = pneg %p287
      // Predicated region
      $region9: #{tpu_custom_call.1} parent=5 // pred_check
        _
      $region10: #{tpu_custom_call.1} parent=5 // pred_check_branch
        %290 = sbr.rel (%p287) target = $region12
      $region11: #{tpu_custom_call.1} parent=5 // pred_region
        %s291 = ssub.s32 %s27, 1
        // Predicated region
        $region13: #{tpu_custom_call.1} parent=11 // pred_check
          %p292 = pneg %p88
        $region14: #{tpu_custom_call.1} parent=11 // pred_check_branch
          %294 = sbr.rel (%p292) target = $region16
        $region15: #{tpu_custom_call.1} parent=11 // pred_region
          %296 = vsyncadd [#allocation6], 0
          %s297 = sshll.u32 %s1, 4
          %s298 = int_to_ptr.hbm [resolvable:$true] %s297
          %s299 = sshll.u32 [#allocation5], 4
          %s300 = int_to_ptr.vmem [resolvable:$true] %s299
          %305 = dma.hbm_to_vmem [thread:$0]  %s298, 256, %s300, [#allocation6], 64, 64, 4
        $region16: #{tpu_custom_call.1} parent=11 // pred_fallthru
          _
        // Predicated region
        $region17: #{tpu_custom_call.1} parent=11 // pred_check
          %p306 = pneg %p109
        $region18: #{tpu_custom_call.1} parent=11 // pred_check_branch
          %308 = sbr.rel (%p306) target = $region20
        $region19: #{tpu_custom_call.1} parent=11 // pred_region
          _
        $region20: #{tpu_custom_call.1} parent=11 // pred_fallthru
          _
        // Predicated region
        $region21: #{tpu_custom_call.1} parent=11 // pred_check
          %p309 = pneg %p130
        $region22: #{tpu_custom_call.1} parent=11 // pred_check_branch
          %311 = sbr.rel (%p309) target = $region24
        $region23: #{tpu_custom_call.1} parent=11 // pred_region
          %313 = vsyncadd [#allocation6], 0
          %s314 = sshll.u32 %s3, 4
          %s315 = int_to_ptr.hbm [resolvable:$true] %s314
          %s316 = sshll.u32 [#allocation7], 4
          %s317 = int_to_ptr.vmem [resolvable:$true] %s316
          %322 = dma.hbm_to_vmem [thread:$0]  %s315, 256, %s317, [#allocation6], 64, 64, 4
        $region24: #{tpu_custom_call.1} parent=11 // pred_fallthru
          _
        // Predicated region
        $region25: #{tpu_custom_call.1} parent=11 // pred_check
          %p323 = pneg %p151
        $region26: #{tpu_custom_call.1} parent=11 // pred_check_branch
          %325 = sbr.rel (%p323) target = $region28
        $region27: #{tpu_custom_call.1} parent=11 // pred_region
          _
        $region28: #{tpu_custom_call.1} parent=11 // pred_fallthru
          _
        // Predicated region
        $region29: #{tpu_custom_call.1} parent=11 // pred_check
          %p326 = pneg %p172
        $region30: #{tpu_custom_call.1} parent=11 // pred_check_branch
          %328 = sbr.rel (%p326) target = $region32
        $region31: #{tpu_custom_call.1} parent=11 // pred_region
          %330 = vsyncadd [#allocation9], 0
          %s331 = sshll.u32 %s5, 4
          %s332 = int_to_ptr.hbm [resolvable:$true] %s331
          %s333 = sshll.u32 [#allocation8], 4
          %s334 = int_to_ptr.vmem [resolvable:$true] %s333
          %339 = dma.hbm_to_vmem [thread:$0]  %s332, 256, %s334, [#allocation9], 64, 64, 4
        $region32: #{tpu_custom_call.1} parent=11 // pred_fallthru
          _
        // Predicated region
        $region33: #{tpu_custom_call.1} parent=11 // pred_check
          %p340 = pneg %p193
        $region34: #{tpu_custom_call.1} parent=11 // pred_check_branch
          %342 = sbr.rel (%p340) target = $region36
        $region35: #{tpu_custom_call.1} parent=11 // pred_region
          _
        $region36: #{tpu_custom_call.1} parent=11 // pred_fallthru
          _
      $region12: #{tpu_custom_call.1} parent=5 // pred_fallthru
        _
      %p343 = scmp.lt.s32.totalorder %s27, 2
      // Predicated region
      $region37: #{tpu_custom_call.1} parent=5 // pred_check
        %p344 = pneg %p343
      $region38: #{tpu_custom_call.1} parent=5 // pred_check_branch
        %346 = sbr.rel (%p344) target = $region40
      $region39: #{tpu_custom_call.1} parent=5 // pred_region
        // Predicated region
        $region41: #{tpu_custom_call.1} parent=39 // pred_check
          %p347 = pneg %p61
        $region42: #{tpu_custom_call.1} parent=39 // pred_check_branch
          %349 = sbr.rel (%p347) target = $region44
        $region43: #{tpu_custom_call.1} parent=39 // pred_region
          %s350 = sand.u32 %s51, 1
          %s351 = scalar_lea.sflag [#allocation3], %s350
          %s352 = sand.u32 %s51, 1
          %s353 = smul.addr %s352, 8
          %s354 = scalar_lea.vmem [#allocation2], %s353
          %356 = vsyncadd %s351, 0
          %s357 = sadd.s32 %s35, %s34
          %s358 = smul.addr %s357, 8
          %s359 = scalar_lea.hbm %s0, %s358
          %s361 = sshll.u32 %s359, 4
          %s362 = int_to_ptr.hbm [resolvable:$true] %s361
          %s363 = sshll.u32 %s354, 4
          %s364 = int_to_ptr.vmem [resolvable:$true] %s363
          %366 = dma.hbm_to_vmem [thread:$0]  %s362, 128, %s364, %s351
        $region44: #{tpu_custom_call.1} parent=39 // pred_fallthru
          _
      $region40: #{tpu_custom_call.1} parent=5 // pred_fallthru
        _
      %p367 = scmp.le.s32.totalorder 1, %s27
      %p368 = scmp.lt.s32.totalorder %s27, 3
      %p369 = pnand %p367, %p368
      %p370 = pneg %p369
      // Predicated region
      $region45: #{tpu_custom_call.1} parent=5 // pred_check
        _
      $region46: #{tpu_custom_call.1} parent=5 // pred_check_branch
        %372 = sbr.rel (%p369) target = $region48
      $region47: #{tpu_custom_call.1} parent=5 // pred_region
        %s373 = ssub.s32 %s27, 1
        %s374 = sand.u32 %s54, 1
        %s375 = scalar_lea.sflag [#allocation3], %s374
        %s376 = sand.u32 %s54, 1
        %s377 = smul.addr %s376, 8
        %s378 = scalar_lea.vmem [#allocation2], %s377
        // Predicated region
        $region49: #{tpu_custom_call.1} parent=47 // pred_check
          %p379 = pneg %p67
        $region50: #{tpu_custom_call.1} parent=47 // pred_check_branch
          %381 = sbr.rel (%p379) target = $region52
        $region51: #{tpu_custom_call.1} parent=47 // pred_region
          %383 = dma.done %s375, 128
        $region52: #{tpu_custom_call.1} parent=47 // pred_fallthru
          _
        // Predicated region
        $region53: #{tpu_custom_call.1} parent=47 // pred_check
          %p384 = pneg %p88
        $region54: #{tpu_custom_call.1} parent=47 // pred_check_branch
          %386 = sbr.rel (%p384) target = $region56
        $region55: #{tpu_custom_call.1} parent=47 // pred_region
          %388 = dma.done [#allocation6], 256
        $region56: #{tpu_custom_call.1} parent=47 // pred_fallthru
          _
        // Predicated region
        $region57: #{tpu_custom_call.1} parent=47 // pred_check
          %p389 = pneg %p130
        $region58: #{tpu_custom_call.1} parent=47 // pred_check_branch
          %391 = sbr.rel (%p389) target = $region60
        $region59: #{tpu_custom_call.1} parent=47 // pred_region
          %393 = dma.done [#allocation6], 256
        $region60: #{tpu_custom_call.1} parent=47 // pred_fallthru
          _
        // Predicated region
        $region61: #{tpu_custom_call.1} parent=47 // pred_check
          %p394 = pneg %p172
        $region62: #{tpu_custom_call.1} parent=47 // pred_check_branch
          %396 = sbr.rel (%p394) target = $region64
        $region63: #{tpu_custom_call.1} parent=47 // pred_region
          %398 = dma.done [#allocation9], 256
        $region64: #{tpu_custom_call.1} parent=47 // pred_fallthru
          _
        %s399 = sand.u32 %s54, 1
        %s400 = scalar_lea.sflag [#allocation3], %s399
        %s401 = sand.u32 %s54, 1
        %s402 = smul.addr %s401, 8
        %s403 = scalar_lea.vmem [#allocation2], %s402
        %p404 = pneg %p67
        %p405 = pneg %p64
        %p406 = pneg %p88
        %p407 = pneg %p85
        %p408 = pneg %p109
        %p409 = pneg %p106
        %p410 = pneg %p130
        %p411 = pneg %p127
        %p412 = pneg %p151
        %p413 = pneg %p148
        %p414 = pneg %p172
        %p415 = pneg %p169
        %p416 = pneg %p193
        %p417 = pneg %p190
        %p418 = pneg %p221
        %p419 = pneg %p218
        %s420 = sand.u32 %s208, 1
        %s421 = scalar_lea.sflag [#allocation4], %s420
        %s422 = sand.u32 %s208, 1
        %s423 = smul.addr %s422, 32
        %s424 = scalar_lea.vmem [#allocation10], %s423
        %p425 = pneg %p249
        %p426 = pneg %p246
        %s427 = sand.u32 %s32, 1
        %s428 = scalar_lea.sflag [#allocation12], %s427
        %s429 = sand.u32 %s236, 1
        %s430 = smul.addr %s429, 32
        %s431 = scalar_lea.vmem [#allocation11], %s430
        %p432 = pneg %p277
        %p433 = pneg %p274
        %s434 = sand.u32 %s32, 1
        %s435 = scalar_lea.sflag [#allocation12], %s434
        %s436 = sand.u32 %s264, 1
        %s437 = smul.addr %s436, 32
        %s438 = scalar_lea.vmem [#allocation13], %s437
        %v440 = vld [vmem:[%s378] sm:$0xff]
        %v441 = vld [vmem:[#allocation5] sm:$0xf]
        %v442 = vld [vmem:[#allocation5 + $0x4] sm:$0xf]
        %v443 = vld [vmem:[#allocation5 + $0x8] sm:$0xf]
        %v444 = vld [vmem:[#allocation5 + $0xc] sm:$0xf]
        %v445 = vpack.c.bf16 %v440, %v440
        %v446 = vld [vmem:[%s2] sm:$0x1]
        %v448 = vperm.slane %v446, 0
        %v454 = vunpack.c.l.b16 %v441
        %v455 = vunpack.c.l.b16 %v442
        %v456 = vunpack.c.l.b16 %v443
        %v457 = vunpack.c.l.b16 %v444
        %v458 = vpack.c.b16 %v455, %v454
        %v459 = vpack.c.b16 %v457, %v456
        %vm462 = vcmask 261120
        %v464 = vsel %vm462, %v445, 0
        %466 = vmatpush.bf16.msra.mxu0 0
        %467 = vmatpush.bf16.msra.mxu0 0
        %468 = vmatpush.bf16.msra.mxu0 0
        %469 = vmatpush.bf16.msra.mxu0 0
        %470 = vmatpush.bf16.msra.mxu0 0
        %471 = vmatpush.bf16.msra.mxu0 0
        %472 = vmatpush.bf16.msra.mxu0 %v459
        %473 = vmatpush.bf16.msra.mxu0 %v458
        %474 = vmatmul.bf16.gmra.mxu0 %v464
        %v475 = vpop.f32.mrf.mxu0
        %v476 = vadd.f32 %v448, %v475
        %v477 = vpop.f32.mrf.mxu0
        %478 = vdwg.mxu0
        %v479 = vmul.f32 %v476, 0.35355338
        %v480 = vld [vmem:[#allocation7] sm:$0xf]
        %v481 = vld [vmem:[#allocation7 + $0x4] sm:$0xf]
        %v482 = vld [vmem:[#allocation7 + $0x8] sm:$0xf]
        %v483 = vld [vmem:[#allocation7 + $0xc] sm:$0xf]
        %v484 = vld [vmem:[%s4] sm:$0x1]
        %v486 = vperm.slane %v484, 0
        %v492 = vunpack.c.l.b16 %v480
        %v493 = vunpack.c.l.b16 %v481
        %v494 = vunpack.c.l.b16 %v482
        %v495 = vunpack.c.l.b16 %v483
        %v496 = vpack.c.b16 %v493, %v492
        %v497 = vpack.c.b16 %v495, %v494
        %500 = vmatpush.bf16.msra.mxu0 0
        %501 = vmatpush.bf16.msra.mxu0 0
        %502 = vmatpush.bf16.msra.mxu0 0
        %503 = vmatpush.bf16.msra.mxu0 0
        %504 = vmatpush.bf16.msra.mxu0 0
        %505 = vmatpush.bf16.msra.mxu0 0
        %506 = vmatpush.bf16.msra.mxu0 %v497
        %507 = vmatpush.bf16.msra.mxu0 %v496
        %508 = vmatmul.bf16.gmra.mxu0 %v464
        %v509 = vpop.f32.mrf.mxu0
        %v510 = vadd.f32 %v486, %v509
        %v511 = vpop.f32.mrf.mxu0
        %512 = vdwg.mxu0
        %v513 = vld [vmem:[#allocation8] sm:$0xf]
        %v514 = vld [vmem:[#allocation8 + $0x4] sm:$0xf]
        %v515 = vld [vmem:[#allocation8 + $0x8] sm:$0xf]
        %v516 = vld [vmem:[#allocation8 + $0xc] sm:$0xf]
        %v517 = vld [vmem:[%s6] sm:$0x1]
        %v519 = vperm.slane %v517, 0
        %v525 = vunpack.c.l.b16 %v513
        %v526 = vunpack.c.l.b16 %v514
        %v527 = vunpack.c.l.b16 %v515
        %v528 = vunpack.c.l.b16 %v516
        %v529 = vpack.c.b16 %v526, %v525
        %v530 = vpack.c.b16 %v528, %v527
        %533 = vmatpush.bf16.msra.mxu0 0
        %534 = vmatpush.bf16.msra.mxu0 0
        %535 = vmatpush.bf16.msra.mxu0 0
        %536 = vmatpush.bf16.msra.mxu0 0
        %537 = vmatpush.bf16.msra.mxu0 0
        %538 = vmatpush.bf16.msra.mxu0 0
        %539 = vmatpush.bf16.msra.mxu0 %v530
        %540 = vmatpush.bf16.msra.mxu0 %v529
        %541 = vmatmul.bf16.gmra.mxu0 %v464
        %v542 = vpop.f32.mrf.mxu0
        %v543 = vadd.f32 %v519, %v542
        %v544 = vpop.f32.mrf.mxu0
        %545 = vdwg.mxu0
        %vm546 = vcmask 64512
        %547 = vst.msk [vmem:[%s424] sm:$0xff] %vm546, %v479
        %548 = vst.msk [vmem:[%s431] sm:$0xff] %vm546, %v510
        %549 = vst.msk [vmem:[%s438] sm:$0xff] %vm546, %v543
        %551 = vrot.lane.b32.xlu0 %v479, 120
        %v552 = vpop.permute.xlu0 %551
        %s554 = scalar_lea.vmem %s424, 8 [#allocation10]
        %555 = vst.msk [vmem:[%s554] sm:$0xff] %vm546, %v552
        %557 = vrot.lane.b32.xlu0 %v510, 120
        %v558 = vpop.permute.xlu0 %557
        %s560 = scalar_lea.vmem %s431, 8 [#allocation11]
        %561 = vst.msk [vmem:[%s560] sm:$0xff] %vm546, %v558
        %563 = vrot.lane.b32.xlu0 %v543, 120
        %v564 = vpop.permute.xlu0 %563
        %s566 = scalar_lea.vmem %s438, 8 [#allocation13]
        %567 = vst.msk [vmem:[%s566] sm:$0xff] %vm546, %v564
        %568 = vrot.lane.b32.xlu0 %v479, 112
        %v569 = vpop.permute.xlu0 %568
        %s571 = scalar_lea.vmem %s424, 16 [#allocation10]
        %572 = vst.msk [vmem:[%s571] sm:$0xff] %vm546, %v569
        %573 = vrot.lane.b32.xlu0 %v510, 112
        %v574 = vpop.permute.xlu0 %573
        %s576 = scalar_lea.vmem %s431, 16 [#allocation11]
        %577 = vst.msk [vmem:[%s576] sm:$0xff] %vm546, %v574
        %578 = vrot.lane.b32.xlu0 %v543, 112
        %v579 = vpop.permute.xlu0 %578
        %s581 = scalar_lea.vmem %s438, 16 [#allocation13]
        %582 = vst.msk [vmem:[%s581] sm:$0xff] %vm546, %v579
        %583 = vrot.lane.b32.xlu0 %v479, 104
        %v584 = vpop.permute.xlu0 %583
        %s586 = scalar_lea.vmem %s424, 24 [#allocation10]
        %587 = vst.msk [vmem:[%s586] sm:$0xff] %vm546, %v584
        %588 = vrot.lane.b32.xlu0 %v510, 104
        %v589 = vpop.permute.xlu0 %588
        %s591 = scalar_lea.vmem %s431, 24 [#allocation11]
        %592 = vst.msk [vmem:[%s591] sm:$0xff] %vm546, %v589
        %593 = vrot.lane.b32.xlu0 %v543, 104
        %v594 = vpop.permute.xlu0 %593
        %s596 = scalar_lea.vmem %s438, 24 [#allocation13]
        %597 = vst.msk [vmem:[%s596] sm:$0xff] %vm546, %v594
        %s598 = sand.u32 %s208, 1
        %s599 = scalar_lea.sflag [#allocation4], %s598
        %s600 = sand.u32 %s208, 1
        %s601 = smul.addr %s600, 32
        %s602 = scalar_lea.vmem [#allocation10], %s601
        %s603 = sand.u32 %s32, 1
        %s604 = scalar_lea.sflag [#allocation12], %s603
        %s605 = sand.u32 %s236, 1
        %s606 = smul.addr %s605, 32
        %s607 = scalar_lea.vmem [#allocation11], %s606
        %s608 = sand.u32 %s32, 1
        %s609 = scalar_lea.sflag [#allocation12], %s608
        %s610 = sand.u32 %s264, 1
        %s611 = smul.addr %s610, 32
        %s612 = scalar_lea.vmem [#allocation13], %s611
        // Predicated region
        $region65: #{tpu_custom_call.1} parent=47 // pred_check
          %p613 = pneg %p218
        $region66: #{tpu_custom_call.1} parent=47 // pred_check_branch
          %615 = sbr.rel (%p613) target = $region68
        $region67: #{tpu_custom_call.1} parent=47 // pred_region
          %617 = vsyncadd %s599, 0
          %s618 = smul.addr %s36, 4
          %s619 = sadd.s32 %s37, %s618
          %s620 = smul.addr %s619, 8
          %s621 = scalar_lea.hbm %s7, %s620
          %s622 = sshll.u32 %s602, 4
          %s623 = int_to_ptr.vmem [resolvable:$true] %s622
          %s624 = sshll.u32 %s621, 4
          %s625 = int_to_ptr.hbm [resolvable:$true] %s624
          %630 = dma.vmem_to_hbm [thread:$0]  %s623, 512, %s625, %s599, 128, 128, 8
        $region68: #{tpu_custom_call.1} parent=47 // pred_fallthru
          _
        // Predicated region
        $region69: #{tpu_custom_call.1} parent=47 // pred_check
          %p631 = pneg %p246
        $region70: #{tpu_custom_call.1} parent=47 // pred_check_branch
          %633 = sbr.rel (%p631) target = $region72
        $region71: #{tpu_custom_call.1} parent=47 // pred_region
          %635 = vsyncadd %s604, 0
          %s636 = smul.addr %s36, 4
          %s637 = sadd.s32 %s37, %s636
          %s638 = smul.addr %s637, 8
          %s639 = scalar_lea.hbm %s8, %s638
          %s640 = sshll.u32 %s607, 4
          %s641 = int_to_ptr.vmem [resolvable:$true] %s640
          %s642 = sshll.u32 %s639, 4
          %s643 = int_to_ptr.hbm [resolvable:$true] %s642
          %648 = dma.vmem_to_hbm [thread:$0]  %s641, 512, %s643, %s604, 128, 128, 8
        $region72: #{tpu_custom_call.1} parent=47 // pred_fallthru
          _
        // Predicated region
        $region73: #{tpu_custom_call.1} parent=47 // pred_check
          %p649 = pneg %p274
        $region74: #{tpu_custom_call.1} parent=47 // pred_check_branch
          %651 = sbr.rel (%p649) target = $region76
        $region75: #{tpu_custom_call.1} parent=47 // pred_region
          %653 = vsyncadd %s609, 0
          %s654 = smul.addr %s36, 4
          %s655 = sadd.s32 %s37, %s654
          %s656 = smul.addr %s655, 8
          %s657 = scalar_lea.hbm %s9, %s656
          %s658 = sshll.u32 %s612, 4
          %s659 = int_to_ptr.vmem [resolvable:$true] %s658
          %s660 = sshll.u32 %s657, 4
          %s661 = int_to_ptr.hbm [resolvable:$true] %s660
          %666 = dma.vmem_to_hbm [thread:$0]  %s659, 512, %s661, %s609, 128, 128, 8
        $region76: #{tpu_custom_call.1} parent=47 // pred_fallthru
          _
      $region48: #{tpu_custom_call.1} parent=5 // pred_fallthru
        _
      %p667 = scmp.le.s32.totalorder 2, %s27
      // Predicated region
      $region77: #{tpu_custom_call.1} parent=5 // pred_check
        %p668 = pneg %p667
      $region78: #{tpu_custom_call.1} parent=5 // pred_check_branch
        %670 = sbr.rel (%p668) target = $region80
      $region79: #{tpu_custom_call.1} parent=5 // pred_region
        %s671 = ssub.s32 %s27, 2
        // Predicated region
        $region81: #{tpu_custom_call.1} parent=79 // pred_check
          %p672 = pneg %p224
        $region82: #{tpu_custom_call.1} parent=79 // pred_check_branch
          %674 = sbr.rel (%p672) target = $region84
        $region83: #{tpu_custom_call.1} parent=79 // pred_region
          %s675 = sand.u32 %s209, 1
          %s676 = scalar_lea.sflag [#allocation4], %s675
          %s677 = sand.u32 %s209, 1
          %s678 = smul.addr %s677, 32
          %s679 = scalar_lea.vmem [#allocation10], %s678
          %681 = dma.done %s676, 512
        $region84: #{tpu_custom_call.1} parent=79 // pred_fallthru
          _
        // Predicated region
        $region85: #{tpu_custom_call.1} parent=79 // pred_check
          %p682 = pneg %p252
        $region86: #{tpu_custom_call.1} parent=79 // pred_check_branch
          %684 = sbr.rel (%p682) target = $region88
        $region87: #{tpu_custom_call.1} parent=79 // pred_region
          %s685 = sand.u32 %s33, 1
          %s686 = scalar_lea.sflag [#allocation12], %s685
          %s687 = sand.u32 %s237, 1
          %s688 = smul.addr %s687, 32
          %s689 = scalar_lea.vmem [#allocation11], %s688
          %691 = dma.done %s686, 512
        $region88: #{tpu_custom_call.1} parent=79 // pred_fallthru
          _
        // Predicated region
        $region89: #{tpu_custom_call.1} parent=79 // pred_check
          %p692 = pneg %p280
        $region90: #{tpu_custom_call.1} parent=79 // pred_check_branch
          %694 = sbr.rel (%p692) target = $region92
        $region91: #{tpu_custom_call.1} parent=79 // pred_region
          %s695 = sand.u32 %s33, 1
          %s696 = scalar_lea.sflag [#allocation12], %s695
          %s697 = sand.u32 %s265, 1
          %s698 = smul.addr %s697, 32
          %s699 = scalar_lea.vmem [#allocation13], %s698
          %701 = dma.done %s696, 512
        $region92: #{tpu_custom_call.1} parent=79 // pred_fallthru
          _
      $region80: #{tpu_custom_call.1} parent=5 // pred_fallthru
        _
    $region6: #{tpu_custom_call.1} parent=1 // loop_footer
      %s31 = sadd.s32 1, %s27
    $region7: #{tpu_custom_call.1} parent=1 // loop_footer_branch
      %26 = sbr.rel target = $region3
    $region8: #{tpu_custom_call.1} parent=1 // loop_exit
      _
    %702 = vsyncpa [#allocation3], 1
    %s703 = scalar_lea.sflag [#allocation3], 1
    %704 = vsyncpa %s703, 1
    %705 = vsyncpa [#allocation6], 1
    %706 = vsyncpa [#allocation9], 1
    %707 = vsyncpa [#allocation4], 1
    %s708 = scalar_lea.sflag [#allocation4], 1
    %709 = vsyncpa %s708, 1
    %710 = vsyncpa [#allocation12], 1
    %s711 = scalar_lea.sflag [#allocation12], 1
    %712 = vsyncpa %s711, 1

</llo_original>
